<compile_context>
chip_gen: v5e
topology: v5e:2x2
jax: 0.10.0
libtpu: 0.0.40
codegen_flags: <defaults>
</compile_context>

<pallas_src>
import functools

import jax
import jax.numpy as jnp
from jax import lax
from jax.experimental import pallas as pl
from jax.experimental.pallas import tpu as pltpu


def _round_up(x, m):
    return ((x + m - 1) // m) * m


# ----------------------------- Pallas kernel -------------------------------
def class_embed_kernel(x_ref, w_ref, b_ref, o_ref):
    # x_ref: (tm, H)   features tile             (sublane-aligned tm)
    # w_ref: (H, tn)   class_embed.weight^T tile (lane-aligned tn; block index
    #                  constant along the inner batch axis -> DMA elided)
    # b_ref: (1, tn)   class_embed.bias tile (f32)
    # o_ref: (tm, tn)  pred_logits tile (full-lane unmasked store)
    acc = jnp.dot(x_ref[...], w_ref[...], preferred_element_type=jnp.float32)
    # Bias add stays in f32 on the accumulator; single cast at the store.
    o_ref[...] = (acc + b_ref[...]).astype(o_ref.dtype)


# -------------------- one-time parameter preparation ------------------------
def prepare_class_embed_params(weight, bias, *, weight_dtype=None, lane=128):
    """Pre-transpose and lane-pad the Linear params ONCE (outside the forward).

    weight: (C, H) PyTorch nn.Linear layout; bias: (C,)
    returns w_t_pad: (H, Cp), b_pad: (1, Cp) f32, with Cp a multiple of 128.
    Pass weight_dtype=jnp.bfloat16 at realistic shapes to halve the dominant
    weight HBM stream (accumulation in the kernel stays f32 either way).
    """
    C, H = weight.shape
    Cp = _round_up(C, lane)
    w_dtype = weight.dtype if weight_dtype is None else weight_dtype
    w_t_pad = jnp.zeros((H, Cp), w_dtype).at[:, :C].set(weight.astype(w_dtype).T)
    b_pad = jnp.zeros((1, Cp), jnp.float32).at[:, :C].set(bias.astype(jnp.float32))
    return w_t_pad, b_pad


# ------------------------------ wrapper -------------------------------------
_RESIDENT_WEIGHT_BYTES = 10 << 20      # hold the whole (H, Cp) weight in VMEM below this
_SINGLE_BUFFER_WEIGHT_BYTES = 2 << 20  # single-buffer large batch-resident operands


@functools.partial(jax.jit, static_argnames=("num_classes",))
def class_embed_pallas(features, w_t_pad, b_pad, *, num_classes):
    """features: (B, H); w_t_pad: (H, Cp); b_pad: (1, Cp); returns (B, num_classes)."""
    out_dtype = features.dtype
    if w_t_pad.dtype == jnp.bfloat16 and features.dtype != jnp.bfloat16:
        features = features.astype(jnp.bfloat16)   # bf16 on both MXU operands

    B, H = features.shape
    Cp = w_t_pad.shape[1]

    # ---- batch tiling (sublane-aligned; tm=256 feeds the 256-wide MXU on v6e/v7x)
    Bp = max(_round_up(B, 8), 8)
    if Bp >= 256 and Bp % 256 == 0:
        tm = 256
    elif Bp >= 128:
        tm = 128
        Bp = _round_up(Bp, 128)
    else:
        tm = Bp
    n_b = Bp // tm

    # ---- class tiling (tn always divides Cp -> no in-jit weight pads/copies)
    w_itemsize = w_t_pad.dtype.itemsize
    if H * Cp * w_itemsize <= _RESIDENT_WEIGHT_BYTES:
        tn = Cp                               # whole weight resident: one DMA per call
        # v7x has 2 TensorCores: if the batch axis gives a single block, split
        # the class axis so both cores get their own (disjoint) weight stripe.
        if n_b == 1 and Cp >= 256 and Cp % 256 == 0:
            tn = Cp // 2
    else:
        # Stream the weight in class stripes; cap at 256 for f32 weights with
        # large H so v5e's 16 MiB default scoped VMEM is respected.
        max_tn = 512 if (w_itemsize < 4 or H < 2048) else 256
        tn = next(t for t in (512, 256, 128) if t <= max_tn and Cp % t == 0)
    n_c = Cp // tn

    # ---- batch padding (skipped when it is a no-op)
    if B == Bp:
        x = features
    else:
        x = jnp.zeros((Bp, H), features.dtype).at[:B, :].set(features)

    # ---- weight/bias BlockSpecs: block index constant along the inner batch
    # axis; single-buffer them when large (double-buffering only doubles VMEM).
    if H * tn * w_itemsize >= _SINGLE_BUFFER_WEIGHT_BYTES:
        w_bufs = 1
        w_spec = pl.BlockSpec((H, tn), lambda j, i: (0, j), pipeline_mode=pl.Buffered(1))
        b_spec = pl.BlockSpec((1, tn), lambda j, i: (0, j), pipeline_mode=pl.Buffered(1))
    else:
        w_bufs = 2
        w_spec = pl.BlockSpec((H, tn), lambda j, i: (0, j))
        b_spec = pl.BlockSpec((1, tn), lambda j, i: (0, j))

    # ---- explicit VMEM budget from the actual tile plan (+ headroom),
    # capped at ~48 MiB so it also fits v7x's 64 MiB physical VMEM.
    out_isz = jnp.dtype(out_dtype).itemsize
    footprint = (2 * tm * H * x.dtype.itemsize
                 + 2 * tm * tn * out_isz
                 + w_bufs * (H * tn * w_itemsize + tn * b_pad.dtype.itemsize))
    vmem_limit = int(min(48 << 20, max(32 << 20, footprint + (2 << 20))))

    # ---- honest DMA plan: weight + bias read once, x re-read once per class
    # stripe, output written once.
    cost = pl.CostEstimate(
        flops=2 * Bp * H * Cp,
        transcendentals=0,
        bytes_accessed=(n_c * Bp * H * x.dtype.itemsize
                        + H * Cp * w_itemsize
                        + Cp * b_pad.dtype.itemsize
                        + Bp * Cp * out_isz),
    )

    # Grid is (class_stripes, batch_tiles): the batch axis is innermost, so the
    # weight/bias tiles are genuinely resident over the batch sweep.
    out_pad = pl.pallas_call(
        class_embed_kernel,
        out_shape=jax.ShapeDtypeStruct((Bp, Cp), out_dtype),
        grid=(n_c, n_b),
        in_specs=[
            pl.BlockSpec((tm, H), lambda j, i: (i, 0)),   # features tile
            w_spec,                                       # weight (resident over batch)
            b_spec,                                       # bias
        ],
        out_specs=pl.BlockSpec((tm, tn), lambda j, i: (i, j)),
        compiler_params=pltpu.CompilerParams(
            dimension_semantics=("parallel", "parallel"),
            vmem_limit_bytes=vmem_limit,
        ),
        cost_estimate=cost,
    )(x, w_t_pad, b_pad)

    if B == Bp and num_classes == Cp:
        return out_pad
    return out_pad[:B, :num_classes]


def _tiny_head(H, Cp):
    # At tiny contractions (K<=256, <=128 classes) the MXU is mostly idle and
    # pallas_call per-step overhead + pad/slice copies dominate; XLA's fused
    # dot+bias wins there on every generation.
    return H <= 256 and Cp <= 128


def class_embed(features, w_t_pad, b_pad, *, num_classes, force_pallas=False):
    if force_pallas or not _tiny_head(features.shape[1], w_t_pad.shape[1]):
        return class_embed_pallas(features, w_t_pad, b_pad, num_classes=num_classes)
    # XLA fallback for tiny heads (padding columns of w/b are zero).
    return (features @ w_t_pad[:, :num_classes].astype(features.dtype)
            + b_pad[0, :num_classes].astype(features.dtype))


# -------------------------- Backbone stub (glue) ----------------------------
# TODO(synk): the real backbone is an injected nn.Module (a ResNet) with no
# definition inside Classifier; modeled as conv3x3 -> ReLU -> global pool.
def backbone_stub(samples_nchw, conv_w):
    feat = lax.conv_general_dilated(
        samples_nchw, conv_w,
        window_strides=(1, 1), padding="SAME",
        dimension_numbers=("NCHW", "OIHW", "NCHW"),
    )
    feat = jnp.maximum(feat, 0.0)
    return jnp.mean(feat, axis=(2, 3))   # (B, hidden_dim)


# ------------------------------- Classifier ---------------------------------
def classifier_forward(samples, params, *, num_classes, force_pallas=False):
    features = backbone_stub(samples, params["backbone_conv_w"])
    logits = class_embed(
        features,
        params["class_embed_w_t_pad"],   # prepared once, already (H, Cp)
        params["class_embed_b_pad"],     # prepared once, already (1, Cp) f32
        num_classes=num_classes,
        force_pallas=force_pallas,
    )
    return {"pred_logits": logits}


if __name__ == "__main__":
    # Small shapes consistent with the module: NCHW input, hidden_dim=32,
    # num_classes=8.
    B, Cin, Hs, Ws = 2, 4, 16, 16
    hidden_dim, num_classes = 32, 8

    key = jax.random.PRNGKey(0)
    k_x, k_conv, k_w, k_b = jax.random.split(key, 4)

    samples = jax.random.normal(k_x, (B, Cin, Hs, Ws), dtype=jnp.float32)

    # Raw PyTorch-layout params.
    backbone_conv_w = 0.1 * jax.random.normal(
        k_conv, (hidden_dim, Cin, 3, 3), dtype=jnp.float32)
    class_embed_w = 0.1 * jax.random.normal(
        k_w, (num_classes, hidden_dim), dtype=jnp.float32)   # (C, H)
    class_embed_b = 0.01 * jax.random.normal(
        k_b, (num_classes,), dtype=jnp.float32)

    # One-time parameter prep (transpose + lane-pad), hoisted out of the
    # per-call path. (Pass weight_dtype=jnp.bfloat16 at realistic shapes.)
    w_t_pad, b_pad = prepare_class_embed_params(class_embed_w, class_embed_b)

    params = {
        "backbone_conv_w": backbone_conv_w,
        "class_embed_w_t_pad": w_t_pad,
        "class_embed_b_pad": b_pad,
    }

    # force_pallas=True exercises the Pallas head even at these toy shapes
    # (the default shape gate would route H=32, Cp=128 to the XLA fallback).
    out = classifier_forward(samples, params, num_classes=num_classes,
                             force_pallas=True)
    logits = jax.block_until_ready(out["pred_logits"])

    # Sanity check against a pure-JAX reference of the Linear head.
    feats = backbone_stub(samples, backbone_conv_w)
    ref = feats @ class_embed_w.T + class_embed_b
    assert logits.shape == (B, num_classes)
    assert jnp.allclose(logits, ref, atol=1e-5, rtol=1e-5)

    # The default (shape-gated) path must agree as well.
    out2 = classifier_forward(samples, params, num_classes=num_classes)
    assert jnp.allclose(jax.block_until_ready(out2["pred_logits"]), ref,
                        atol=1e-5, rtol=1e-5)

    print("KERNEL_OK")
</pallas_src>

<mosaic_0001>
module attributes {stable_mosaic.version = 11 : i64} {
  func.func @class_embed_kernel(%arg0: i32, %arg1: i32, %arg2: memref<8x32xf32, #tpu.memory_space<vmem>>, %arg3: memref<32x128xf32, #tpu.memory_space<vmem>>, %arg4: memref<1x128xf32, #tpu.memory_space<vmem>>, %arg5: memref<8x128xf32, #tpu.memory_space<vmem>>) attributes {dimension_semantics = [#tpu.dimension_semantics<parallel>, #tpu.dimension_semantics<parallel>], iteration_bounds = array<i64: 1, 1>, scalar_prefetch = 0 : i64, scratch_operands = 0 : i64, tpu.core_type = #tpu.core_type<tc>, window_params = [{transform_indices = @transform_0, window_bounds = array<i64: 8, 32>}, {transform_indices = @transform_1, window_bounds = array<i64: 32, 128>}, {transform_indices = @transform_2, window_bounds = array<i64: 1, 128>}, {transform_indices = @transform_3, window_bounds = array<i64: 8, 128>}]} {
    %c0 = arith.constant 0 : index
    %c0_0 = arith.constant 0 : index
    %0 = vector.load %arg2[%c0, %c0_0] : memref<8x32xf32, #tpu.memory_space<vmem>>, vector<8x32xf32>
    %c0_1 = arith.constant 0 : index
    %c0_2 = arith.constant 0 : index
    %1 = vector.load %arg3[%c0_1, %c0_2] : memref<32x128xf32, #tpu.memory_space<vmem>>, vector<32x128xf32>
    %cst = arith.constant dense<0.000000e+00> : vector<8x128xf32>
    %2 = tpu.matmul %0, %1, %cst {dimension_numbers = #tpu.dot_dimension_numbers<[1], [0], [0], [1], [0, 0, 1, 1], [], []>} : vector<8x32xf32>, vector<32x128xf32>, vector<8x128xf32> -> vector<8x128xf32>
    %c0_3 = arith.constant 0 : index
    %c0_4 = arith.constant 0 : index
    %3 = vector.load %arg4[%c0_3, %c0_4] : memref<1x128xf32, #tpu.memory_space<vmem>>, vector<1x128xf32>
    %4 = vector.broadcast %3 : vector<1x128xf32> to vector<8x128xf32>
    %5 = arith.addf %2, %4 : vector<8x128xf32>
    %c0_5 = arith.constant 0 : index
    %c0_6 = arith.constant 0 : index
    %6 = vector.load %arg5[%c0_5, %c0_6] : memref<8x128xf32, #tpu.memory_space<vmem>>, vector<8x128xf32>
    tpu.vector_store %arg5[%c0_5, %c0_6], %5 {strides = array<i32>} : memref<8x128xf32, #tpu.memory_space<vmem>>, vector<8x128xf32>,
    return
  }
  func.func @transform_0(%arg0: i32, %arg1: i32) -> (i32, i32) {
    %c0_i32 = arith.constant 0 : i32
    %c0_i32_0 = arith.constant 0 : i32
    return %arg1, %c0_i32 : i32, i32
  }
  func.func @transform_1(%arg0: i32, %arg1: i32) -> (i32, i32) {
    %c0_i32 = arith.constant 0 : i32
    %c0_i32_0 = arith.constant 0 : i32
    return %c0_i32, %arg0 : i32, i32
  }
  func.func @transform_2(%arg0: i32, %arg1: i32) -> (i32, i32) {
    %c0_i32 = arith.constant 0 : i32
    %c0_i32_0 = arith.constant 0 : i32
    return %c0_i32, %arg0 : i32, i32
  }
  func.func @transform_3(%arg0: i32, %arg1: i32) -> (i32, i32) {
    %c0_i32 = arith.constant 0 : i32
    return %arg1, %arg0 : i32, i32
  }
}

</mosaic_0001>

<llo_original>
// kernel: class_embed_pallas.1
$region0: #{class_embed_pallas.1}
  #allocation0 [shape = 'u32[]', space=smem, size = 0x4, offset = 0x4, fixed_abs, tag = 'smem constant byte address 0x4 - core index']
  #allocation1 [shape = 'u32[72,128]{1,0:T(1,128)}', space=vmem, size = 0x9000, scoped, tag = 'internal scratch']
  %s0 = inlined_call_operand.vmem [shape: f32[8,32], index: 0, kind: input, shape index: {}]
  %s1 = inlined_call_operand.hbm [shape: f32[32,128], index: 1, kind: input, shape index: {}]
  %s2 = inlined_call_operand.vmem [shape: f32[1,128], index: 2, kind: input, shape index: {}]
  %s3 = inlined_call_operand.vmem [shape: f32[8,128], index: 3, kind: output, shape index: {}]
  %s4 = sld [smem:[#allocation0]]
  $region26: #{class_embed_pallas.1} parent=0
    _
  %s6 = ssub.s32 1, %s4
  %s7 = scalar_select 0, %s6, %s4
  $region1: #{class_embed_pallas.1} parent=0
    #allocation2 [shape = 'u8[16384]{0}', space=vmem, size = 0x4000, scoped, tag = 'input window, operand 1, single buffered']
    #allocation3 [shape = 's32[1]{0}', space=sflag, size = 0x4, scoped, tag = 'scoped memory for class_embed_pallas.1']
    %8 = vsyncpa [#allocation3], 0
    // Predicated region
    $region2: #{class_embed_pallas.1} parent=1 // pred_check
      _
    $region3: #{class_embed_pallas.1} parent=1 // pred_check_branch
      %10 = sbr.rel (0) target = $region5
    $region4: #{class_embed_pallas.1} parent=1 // pred_region
      _
    $region5: #{class_embed_pallas.1} parent=1 // pred_fallthru
      _
    // Predicated region
    $region6: #{class_embed_pallas.1} parent=1 // pred_check
      _
    $region7: #{class_embed_pallas.1} parent=1 // pred_check_branch
      %12 = sbr.rel (0) target = $region9
    $region8: #{class_embed_pallas.1} parent=1 // pred_region
      %14 = vsyncadd [#allocation3], 0
      %s15 = sshll.u32 %s1, 4
      %s16 = int_to_ptr.hbm [resolvable:$true] %s15
      %s17 = sshll.u32 [#allocation2], 4
      %s18 = int_to_ptr.vmem [resolvable:$true] %s17
      %23 = dma.hbm_to_vmem [thread:$0]  %s16, 512, %s18, [#allocation3], 128, 128, 8
    $region9: #{class_embed_pallas.1} parent=1 // pred_fallthru
      _
    // Predicated region
    $region10: #{class_embed_pallas.1} parent=1 // pred_check
      _
    $region11: #{class_embed_pallas.1} parent=1 // pred_check_branch
      %25 = sbr.rel (0) target = $region13
    $region12: #{class_embed_pallas.1} parent=1 // pred_region
      _
    $region13: #{class_embed_pallas.1} parent=1 // pred_fallthru
      _
    // Predicated region
    $region14: #{class_embed_pallas.1} parent=1 // pred_check
      _
    $region15: #{class_embed_pallas.1} parent=1 // pred_check_branch
      %27 = sbr.rel (0) target = $region17
    $region16: #{class_embed_pallas.1} parent=1 // pred_region
      %29 = dma.done [#allocation3], 512
    $region17: #{class_embed_pallas.1} parent=1 // pred_fallthru
      _
    %v30 = vld [vmem:[%s0] sm:$0xff]
    %v31 = vld [vmem:[#allocation2] sm:$0xff]
    %v32 = vld [vmem:[#allocation2 + $0x8] sm:$0xff]
    %v33 = vld [vmem:[#allocation2 + $0x10] sm:$0xff]
    %v34 = vld [vmem:[#allocation2 + $0x18] sm:$0xff]
    %v35 = vld [vmem:[%s2] sm:$0x1]
    %v37 = vperm.slane %v35, 0
    %vm39 = vcmask 261120
    %v41 = vsel %vm39, %v30, 0
    %43 = vmatpush.msra.mxu0 0.0
    %44 = vmatpush.msra.mxu0 0.0
    %45 = vmatpush.msra.mxu0 0.0
    %46 = vmatpush.msra.mxu0 0.0
    %47 = vmatpush.msra.mxu0 0.0
    %48 = vmatpush.msra.mxu0 0.0
    %49 = vmatpush.msra.mxu0 0.0
    %50 = vmatpush.msra.mxu0 0.0
    %51 = vmatpush.msra.mxu0 0.0
    %52 = vmatpush.msra.mxu0 0.0
    %53 = vmatpush.msra.mxu0 0.0
    %54 = vmatpush.msra.mxu0 0.0
    %55 = vmatpush.msra.mxu0 %v34
    %56 = vmatpush.msra.mxu0 %v33
    %57 = vmatpush.msra.mxu0 %v32
    %58 = vmatpush.msra.mxu0 %v31
    %59 = vmatmul.f32.gmra.mxu0 %v41
    %v60 = vpop.f32.mrf.mxu0
    %v61 = vadd.f32 %v37, %v60
    %62 = vdwg.mxu0
    %63 = vst [vmem:[%s3] sm:$0xff] %v61
    // Predicated region
    $region18: #{class_embed_pallas.1} parent=1 // pred_check
      _
    $region19: #{class_embed_pallas.1} parent=1 // pred_check_branch
      %65 = sbr.rel (0) target = $region21
    $region20: #{class_embed_pallas.1} parent=1 // pred_region
      _
    $region21: #{class_embed_pallas.1} parent=1 // pred_fallthru
      _
    // Predicated region
    $region22: #{class_embed_pallas.1} parent=1 // pred_check
      _
    $region23: #{class_embed_pallas.1} parent=1 // pred_check_branch
      %67 = sbr.rel (0) target = $region25
    $region24: #{class_embed_pallas.1} parent=1 // pred_region
      _
    $region25: #{class_embed_pallas.1} parent=1 // pred_fallthru
      _
    %68 = vsyncpa [#allocation3], 1

</llo_original>
